<compile_context>
chip_gen: v6e
topology: v6e:2x2x1
jax: 0.10.0
libtpu: 0.0.40
codegen_flags: <defaults>
</compile_context>

<pallas_src>
import jax
import jax.numpy as jnp
from jax import lax
from jax.experimental import pallas as pl
from jax.experimental.pallas import tpu as pltpu


def cbow_kernel(ctx_ref, w_ref, b_ref, o_ref):
    # ctx_ref: (B, E)  context vectors (same block every grid step -> resident)
    # w_ref:   (TV, E) tile of the linear weight (streamed over the grid)
    # b_ref:   (1, TV) tile of the bias
    # o_ref:   (B, TV) tile of the output logits
    logits = lax.dot_general(
        ctx_ref[...],
        w_ref[...],
        dimension_numbers=(((1,), (1,)), ((), ())),   # contract E with E, no .T
        preferred_element_type=jnp.float32,
    )
    o_ref[...] = logits + b_ref[...]


def cbow_forward(token_ids, emb_table, w, b, *, tv=256):
    """token_ids: (B, C) int32; emb_table: (V, E); w: (V, E); b: (V,) -> (B, V)."""
    B, C = token_ids.shape
    V, E = w.shape

    # --- Glue (fused by XLA, done ONCE, outside the vocab loop) -------------
    # embedding gather + nn.Embedding(max_norm=1) renorm + mean over context.
    emb = jnp.take(emb_table, token_ids, axis=0)              # (B, C, E)
    norm = jnp.linalg.norm(emb, axis=-1, keepdims=True)       # (B, C, 1)
    scale = jnp.where(norm > 1.0, 1.0 / (norm + 1e-7), 1.0)
    ctx = jnp.mean(emb * scale, axis=1).astype(jnp.float32)   # (B, E)

    # --- Vocab tiling: pad to a multiple of tv so nothing is dropped --------
    n_tiles = pl.cdiv(V, tv)
    V_pad = n_tiles * tv
    if V_pad != V:
        w_p = jnp.pad(w, ((0, V_pad - V), (0, 0)))
        b_p = jnp.pad(b, (0, V_pad - V))
    else:
        w_p, b_p = w, b
    b2 = b_p.reshape(1, V_pad)

    out = pl.pallas_call(
        cbow_kernel,
        out_shape=jax.ShapeDtypeStruct((B, V_pad), jnp.float32),
        grid_spec=pltpu.PrefetchScalarGridSpec(
            num_scalar_prefetch=0,
            grid=(n_tiles,),
            in_specs=[
                pl.BlockSpec((B, E), lambda j: (0, 0)),    # ctx: full, resident
                pl.BlockSpec((tv, E), lambda j: (j, 0)),   # weight tile (streamed)
                pl.BlockSpec((1, tv), lambda j: (0, j)),   # bias tile
            ],
            out_specs=pl.BlockSpec((B, tv), lambda j: (0, j)),
        ),
        compiler_params=pltpu.CompilerParams(
            dimension_semantics=("parallel",),
        ),
    )(ctx, w_p, b2)

    return out[:, :V] if V_pad != V else out


def cbow_reference(token_ids, emb_table, w, b):
    emb = jnp.take(emb_table, token_ids, axis=0)
    norm = jnp.linalg.norm(emb, axis=-1, keepdims=True)
    scale = jnp.where(norm > 1.0, 1.0 / (norm + 1e-7), 1.0)
    ctx = jnp.mean(emb * scale, axis=1)
    return ctx @ w.T + b


if __name__ == "__main__":
    # Small shapes consistent with the module's forward:
    #   vocab_size=256, embedding_size=128, batch=8, context window=4
    VOCAB, EMBED, BATCH, CTX = 256, 128, 8, 4

    key = jax.random.PRNGKey(0)
    k_emb, k_w, k_b, k_ids = jax.random.split(key, 4)

    # Deterministic parameter init (matches module shapes):
    #   embeddings.weight ~ N(0, 1)   (nn.Embedding default)
    #   linear.weight, linear.bias ~ U(-1/sqrt(E), 1/sqrt(E))  (nn.Linear default)
    emb_table = jax.random.normal(k_emb, (VOCAB, EMBED), dtype=jnp.float32)
    bound = 1.0 / (EMBED ** 0.5)
    w = jax.random.uniform(k_w, (VOCAB, EMBED), minval=-bound, maxval=bound,
                           dtype=jnp.float32)
    b = jax.random.uniform(k_b, (VOCAB,), minval=-bound, maxval=bound,
                           dtype=jnp.float32)

    token_ids = jax.random.randint(k_ids, (BATCH, CTX), 0, VOCAB, dtype=jnp.int32)

    out = cbow_forward(token_ids, emb_table, w, b)
    out = jax.block_until_ready(out)

    ref = cbow_reference(token_ids, emb_table, w, b)
    assert out.shape == (BATCH, VOCAB)
    assert jnp.allclose(out, ref, atol=1e-5, rtol=1e-5), "mismatch vs JAX reference"

    print("KERNEL_OK")
</pallas_src>

<mosaic_0001>
module attributes {stable_mosaic.version = 11 : i64} {
  func.func @cbow_kernel(%arg0: i32, %arg1: memref<8x128xf32, #tpu.memory_space<vmem>>, %arg2: memref<256x128xf32, #tpu.memory_space<vmem>>, %arg3: memref<1x256xf32, #tpu.memory_space<vmem>>, %arg4: memref<8x256xf32, #tpu.memory_space<vmem>>) attributes {dimension_semantics = [#tpu.dimension_semantics<parallel>], iteration_bounds = array<i64: 1>, scalar_prefetch = 0 : i64, scratch_operands = 0 : i64, tpu.core_type = #tpu.core_type<tc>, window_params = [{pipeline_mode = #tpu.pipeline_mode<synchronous>, transform_indices = @transform_0, window_bounds = array<i64: 8, 128>}, {transform_indices = @transform_1, window_bounds = array<i64: 256, 128>}, {transform_indices = @transform_2, window_bounds = array<i64: 1, 256>}, {transform_indices = @transform_3, window_bounds = array<i64: 8, 256>}]} {
    %c0 = arith.constant 0 : index
    %c0_0 = arith.constant 0 : index
    %0 = vector.load %arg1[%c0, %c0_0] : memref<8x128xf32, #tpu.memory_space<vmem>>, vector<8x128xf32>
    %c0_1 = arith.constant 0 : index
    %c0_2 = arith.constant 0 : index
    %1 = vector.load %arg2[%c0_1, %c0_2] : memref<256x128xf32, #tpu.memory_space<vmem>>, vector<256x128xf32>
    %cst = arith.constant dense<0.000000e+00> : vector<8x256xf32>
    %2 = tpu.matmul %0, %1, %cst {dimension_numbers = #tpu.dot_dimension_numbers<[1], [1], [0], [0], [0, 0, 1, 0], [], []>} : vector<8x128xf32>, vector<256x128xf32>, vector<8x256xf32> -> vector<8x256xf32>
    %c0_3 = arith.constant 0 : index
    %c0_4 = arith.constant 0 : index
    %3 = vector.load %arg3[%c0_3, %c0_4] : memref<1x256xf32, #tpu.memory_space<vmem>>, vector<1x256xf32>
    %4 = vector.broadcast %3 : vector<1x256xf32> to vector<8x256xf32>
    %5 = arith.addf %2, %4 : vector<8x256xf32>
    %c0_5 = arith.constant 0 : index
    %c0_6 = arith.constant 0 : index
    %6 = vector.load %arg4[%c0_5, %c0_6] : memref<8x256xf32, #tpu.memory_space<vmem>>, vector<8x256xf32>
    tpu.vector_store %arg4[%c0_5, %c0_6], %5 {strides = array<i32>} : memref<8x256xf32, #tpu.memory_space<vmem>>, vector<8x256xf32>,
    return
  }
  func.func @transform_0(%arg0: i32) -> (i32, i32) {
    %c0_i32 = arith.constant 0 : i32
    %c0_i32_0 = arith.constant 0 : i32
    %c0_i32_1 = arith.constant 0 : i32
    return %c0_i32, %c0_i32_0 : i32, i32
  }
  func.func @transform_1(%arg0: i32) -> (i32, i32) {
    %c0_i32 = arith.constant 0 : i32
    %c0_i32_0 = arith.constant 0 : i32
    return %arg0, %c0_i32 : i32, i32
  }
  func.func @transform_2(%arg0: i32) -> (i32, i32) {
    %c0_i32 = arith.constant 0 : i32
    %c0_i32_0 = arith.constant 0 : i32
    return %c0_i32, %arg0 : i32, i32
  }
  func.func @transform_3(%arg0: i32) -> (i32, i32) {
    %c0_i32 = arith.constant 0 : i32
    %c0_i32_0 = arith.constant 0 : i32
    return %c0_i32, %arg0 : i32, i32
  }
}

</mosaic_0001>

<llo_original>
// kernel: tpu_custom_call.1
$region0: #{tpu_custom_call.1}
  #allocation0 [shape = 'u32[]', space=smem, size = 0x4, offset = 0x4, fixed_abs, tag = 'smem constant byte address 0x4 - core index']
  #allocation1 [shape = 'u32[144,128]{1,0:T(1,128)}', space=vmem, size = 0x12000, scoped, tag = 'internal scratch']
  %s0 = inlined_call_operand.hbm [shape: f32[8,128], index: 0, kind: input, shape index: {}]
  %s1 = inlined_call_operand.hbm [shape: f32[256,128], index: 1, kind: input, shape index: {}]
  %s2 = inlined_call_operand.vmem [shape: f32[1,256], index: 2, kind: input, shape index: {}]
  %s3 = inlined_call_operand.hbm [shape: f32[8,256], index: 3, kind: output, shape index: {}]
  %s4 = sld [smem:[#allocation0]]
  $region30: #{tpu_custom_call.1} parent=0
    _
  %s6 = ssub.s32 1, %s4
  %s7 = scalar_select 0, %s6, %s4
  $region1: #{tpu_custom_call.1} parent=0
    #allocation2 [shape = 'u8[4096]{0}', space=vmem, size = 0x1000, scoped, tag = 'input window, operand 0, single buffered']
    #allocation3 [shape = 's32[1]{0}', space=sflag, size = 0x4, scoped, tag = 'scoped memory for tpu_custom_call.1']
    #allocation4 [shape = 's32[1]{0}', space=sflag, size = 0x4, scoped, tag = 'scoped memory for tpu_custom_call.1']
    #allocation5 [shape = 'u8[131072]{0}', space=vmem, size = 0x20000, scoped, tag = 'input window, operand 1, single buffered']
    #allocation6 [shape = 's32[1]{0}', space=sflag, size = 0x4, scoped, tag = 'scoped memory for tpu_custom_call.1']
    #allocation7 [shape = 'u8[8192]{0}', space=vmem, size = 0x2000, scoped, tag = 'output window, operand 0, single buffered']
    %8 = vsyncpa [#allocation3], 0
    %9 = vsyncpa [#allocation6], 0
    %10 = vsyncpa [#allocation4], 0
    // Predicated region
    $region2: #{tpu_custom_call.1} parent=1 // pred_check
      _
    $region3: #{tpu_custom_call.1} parent=1 // pred_check_branch
      %12 = sbr.rel (0) target = $region5
    $region4: #{tpu_custom_call.1} parent=1 // pred_region
      %s14 = ssub.s32 128, 128
      %15 = vsyncadd [#allocation3], %s14
      %s17 = sshll.u32 [#allocation2], 4
      %s18 = int_to_ptr.vmem [resolvable:$true] %s17
      %20 = dma.hbm_to_vmem [thread:$0]  %s0, 128, %s18, [#allocation3]
    $region5: #{tpu_custom_call.1} parent=1 // pred_fallthru
      _
    // Predicated region
    $region6: #{tpu_custom_call.1} parent=1 // pred_check
      _
    $region7: #{tpu_custom_call.1} parent=1 // pred_check_branch
      %22 = sbr.rel (0) target = $region9
    $region8: #{tpu_custom_call.1} parent=1 // pred_region
      %s24 = ssub.s32 4096, 4096
      %25 = vsyncadd [#allocation6], %s24
      %s26 = sshll.u32 [#allocation5], 4
      %s27 = int_to_ptr.vmem [resolvable:$true] %s26
      %32 = dma.hbm_to_vmem [thread:$0]  %s1, 4096, %s27, [#allocation6], 128, 128, 8
    $region9: #{tpu_custom_call.1} parent=1 // pred_fallthru
      _
    // Predicated region
    $region10: #{tpu_custom_call.1} parent=1 // pred_check
      _
    $region11: #{tpu_custom_call.1} parent=1 // pred_check_branch
      %34 = sbr.rel (0) target = $region13
    $region12: #{tpu_custom_call.1} parent=1 // pred_region
      _
    $region13: #{tpu_custom_call.1} parent=1 // pred_fallthru
      _
    // Predicated region
    $region14: #{tpu_custom_call.1} parent=1 // pred_check
      _
    $region15: #{tpu_custom_call.1} parent=1 // pred_check_branch
      %36 = sbr.rel (0) target = $region17
    $region16: #{tpu_custom_call.1} parent=1 // pred_region
      %37 = dma.done [#allocation3], 128
    $region17: #{tpu_custom_call.1} parent=1 // pred_fallthru
      _
    // Predicated region
    $region18: #{tpu_custom_call.1} parent=1 // pred_check
      _
    $region19: #{tpu_custom_call.1} parent=1 // pred_check_branch
      %39 = sbr.rel (0) target = $region21
    $region20: #{tpu_custom_call.1} parent=1 // pred_region
      %40 = dma.done [#allocation6], 4096
    $region21: #{tpu_custom_call.1} parent=1 // pred_fallthru
      _
    %v41 = vld [vmem:[#allocation2] sm:$0xff]
    %v42 = vld [vmem:[#allocation5] sm:$0xff]
    %v43 = vld [vmem:[#allocation5 + $0x8] sm:$0xff]
    %v44 = vld [vmem:[#allocation5 + $0x10] sm:$0xff]
    %v45 = vld [vmem:[#allocation5 + $0x18] sm:$0xff]
    %v46 = vld [vmem:[#allocation5 + $0x20] sm:$0xff]
    %v47 = vld [vmem:[#allocation5 + $0x28] sm:$0xff]
    %v48 = vld [vmem:[#allocation5 + $0x30] sm:$0xff]
    %v49 = vld [vmem:[#allocation5 + $0x38] sm:$0xff]
    %v50 = vld [vmem:[#allocation5 + $0x40] sm:$0xff]
    %v51 = vld [vmem:[#allocation5 + $0x48] sm:$0xff]
    %v52 = vld [vmem:[#allocation5 + $0x50] sm:$0xff]
    %v53 = vld [vmem:[#allocation5 + $0x58] sm:$0xff]
    %v54 = vld [vmem:[#allocation5 + $0x60] sm:$0xff]
    %v55 = vld [vmem:[#allocation5 + $0x68] sm:$0xff]
    %v56 = vld [vmem:[#allocation5 + $0x70] sm:$0xff]
    %v57 = vld [vmem:[#allocation5 + $0x78] sm:$0xff]
    %v58 = vld [vmem:[#allocation5 + $0x80] sm:$0xff]
    %v59 = vld [vmem:[#allocation5 + $0x88] sm:$0xff]
    %v60 = vld [vmem:[#allocation5 + $0x90] sm:$0xff]
    %v61 = vld [vmem:[#allocation5 + $0x98] sm:$0xff]
    %v62 = vld [vmem:[#allocation5 + $0xa0] sm:$0xff]
    %v63 = vld [vmem:[#allocation5 + $0xa8] sm:$0xff]
    %v64 = vld [vmem:[#allocation5 + $0xb0] sm:$0xff]
    %v65 = vld [vmem:[#allocation5 + $0xb8] sm:$0xff]
    %v66 = vld [vmem:[#allocation5 + $0xc0] sm:$0xff]
    %v67 = vld [vmem:[#allocation5 + $0xc8] sm:$0xff]
    %v68 = vld [vmem:[#allocation5 + $0xd0] sm:$0xff]
    %v69 = vld [vmem:[#allocation5 + $0xd8] sm:$0xff]
    %v70 = vld [vmem:[#allocation5 + $0xe0] sm:$0xff]
    %v71 = vld [vmem:[#allocation5 + $0xe8] sm:$0xff]
    %v72 = vld [vmem:[#allocation5 + $0xf0] sm:$0xff]
    %v73 = vld [vmem:[#allocation5 + $0xf8] sm:$0xff]
    %v74 = vld [vmem:[%s2] sm:$0x3]
    %v76 = vlaneseq
    %v77 = vshrl.u32 %v76, 7
    %v78 = vsub.s32 0, %v77
    %v79 = vrot.slane %v74, %v78
    %v80 = vlaneseq
    %v81 = vshrl.u32 %v80, 7
    %v82 = vsub.s32 1, %v81
    %v83 = vrot.slane %v74, %v82
    %86 = vmatprep.subr.mxu0 0.0
    %87 = vmatpush1.xpose.msra.mxu0 %v57
    %88 = vmatprep.subr.mxu0 0.0
    %89 = vmatpush1.xpose.msra.mxu0 %v56
    %90 = vmatprep.subr.mxu0 0.0
    %91 = vmatpush1.xpose.msra.mxu0 %v55
    %92 = vmatprep.subr.mxu0 0.0
    %93 = vmatpush1.xpose.msra.mxu0 %v54
    %94 = vmatprep.subr.mxu0 0.0
    %95 = vmatpush1.xpose.msra.mxu0 %v53
    %96 = vmatprep.subr.mxu0 0.0
    %97 = vmatpush1.xpose.msra.mxu0 %v52
    %98 = vmatprep.subr.mxu0 0.0
    %99 = vmatpush1.xpose.msra.mxu0 %v51
    %100 = vmatprep.subr.mxu0 0.0
    %101 = vmatpush1.xpose.msra.mxu0 %v50
    %102 = vmatprep.subr.mxu0 0.0
    %103 = vmatpush1.xpose.msra.mxu0 %v49
    %104 = vmatprep.subr.mxu0 0.0
    %105 = vmatpush1.xpose.msra.mxu0 %v48
    %106 = vmatprep.subr.mxu0 0.0
    %107 = vmatpush1.xpose.msra.mxu0 %v47
    %108 = vmatprep.subr.mxu0 0.0
    %109 = vmatpush1.xpose.msra.mxu0 %v46
    %110 = vmatprep.subr.mxu0 0.0
    %111 = vmatpush1.xpose.msra.mxu0 %v45
    %112 = vmatprep.subr.mxu0 0.0
    %113 = vmatpush1.xpose.msra.mxu0 %v44
    %114 = vmatprep.subr.mxu0 0.0
    %115 = vmatpush1.xpose.msra.mxu0 %v43
    %116 = vmatprep.subr.mxu0 0.0
    %117 = vmatpush1.xpose.msra.mxu0 %v42
    %118 = vmatprep.subr.mxu0 0.0
    %119 = vmatpush2.xpose.msra.mxu0 %v73
    %120 = vmatprep.subr.mxu0 0.0
    %121 = vmatpush2.xpose.msra.mxu0 %v72
    %122 = vmatprep.subr.mxu0 0.0
    %123 = vmatpush2.xpose.msra.mxu0 %v71
    %124 = vmatprep.subr.mxu0 0.0
    %125 = vmatpush2.xpose.msra.mxu0 %v70
    %126 = vmatprep.subr.mxu0 0.0
    %127 = vmatpush2.xpose.msra.mxu0 %v69
    %128 = vmatprep.subr.mxu0 0.0
    %129 = vmatpush2.xpose.msra.mxu0 %v68
    %130 = vmatprep.subr.mxu0 0.0
    %131 = vmatpush2.xpose.msra.mxu0 %v67
    %132 = vmatprep.subr.mxu0 0.0
    %133 = vmatpush2.xpose.msra.mxu0 %v66
    %134 = vmatprep.subr.mxu0 0.0
    %135 = vmatpush2.xpose.msra.mxu0 %v65
    %136 = vmatprep.subr.mxu0 0.0
    %137 = vmatpush2.xpose.msra.mxu0 %v64
    %138 = vmatprep.subr.mxu0 0.0
    %139 = vmatpush2.xpose.msra.mxu0 %v63
    %140 = vmatprep.subr.mxu0 0.0
    %141 = vmatpush2.xpose.msra.mxu0 %v62
    %142 = vmatprep.subr.mxu0 0.0
    %143 = vmatpush2.xpose.msra.mxu0 %v61
    %144 = vmatprep.subr.mxu0 0.0
    %145 = vmatpush2.xpose.msra.mxu0 %v60
    %146 = vmatprep.subr.mxu0 0.0
    %147 = vmatpush2.xpose.msra.mxu0 %v59
    %148 = vmatprep.subr.mxu0 0.0
    %149 = vmatpush2.xpose.msra.mxu0 %v58
    %150 = vmatprep.mubr.f32.mxu0 0.0
    %151 = vmatmul.mubr.f32.gmra.mxu0 %v41
    %v152 = vpop.f32.mrf.mxu0
    %v153 = vadd.f32 %v79, %v152
    %v154 = vpop.f32.mrf.mxu0
    %v155 = vadd.f32 %v83, %v154
    %156 = vdwg.mxu0
    %157 = vst [vmem:[#allocation7] sm:$0xff] %v153
    %158 = vst [vmem:[#allocation7 + $0x8] sm:$0xff] %v155
    // Predicated region
    $region22: #{tpu_custom_call.1} parent=1 // pred_check
      _
    $region23: #{tpu_custom_call.1} parent=1 // pred_check_branch
      %160 = sbr.rel (0) target = $region25
    $region24: #{tpu_custom_call.1} parent=1 // pred_region
      %s162 = ssub.s32 256, 256
      %163 = vsyncadd [#allocation4], %s162
      %s165 = sshll.u32 [#allocation7], 4
      %s166 = int_to_ptr.vmem [resolvable:$true] %s165
      %168 = dma.vmem_to_hbm [thread:$0]  %s166, 256, %s3, [#allocation4]
    $region25: #{tpu_custom_call.1} parent=1 // pred_fallthru
      _
    // Predicated region
    $region26: #{tpu_custom_call.1} parent=1 // pred_check
      _
    $region27: #{tpu_custom_call.1} parent=1 // pred_check_branch
      %170 = sbr.rel (0) target = $region29
    $region28: #{tpu_custom_call.1} parent=1 // pred_region
      %171 = dma.done [#allocation4], 256
    $region29: #{tpu_custom_call.1} parent=1 // pred_fallthru
      _
    %172 = vsyncpa [#allocation3], 1
    %173 = vsyncpa [#allocation6], 1
    %174 = vsyncpa [#allocation4], 1

</llo_original>
